<compile_context>
chip_gen: v7x
topology: tpu7x:2x2x1
jax: 0.10.0
libtpu: 0.0.40
codegen_flags: <defaults>
</compile_context>

<pallas_src>
import functools
import math

import jax
import jax.numpy as jnp
from jax.experimental import pallas as pl
from jax.experimental.pallas import tpu as pltpu

EPS = 1.0                        # LossT.__init__ hardcodes eps = 1
CLAMP_MIN = 1e-7
LANES = 128
SUBLANES = 8
BLOCK_ELEMS = SUBLANES * LANES   # main/tail split granularity (1024)
INV_PI = 1.0 / math.pi           # 0.5 * (2/pi)
HALF_PI = 0.5 * math.pi

# 17-degree odd minimax coefficients for atan on [-1, 1] (DirectXMath set);
# exact at the endpoint (poly(1) == pi/4), max abs error ~1e-7.
_ATAN_COEFFS = (-0.3333314528, 0.1999355085, -0.1420889944, 0.1065626393,
                -0.0752896400, 0.0429096138, -0.0161657367, 0.0028662257)


def _fast_atan(x):
    """atan(x) in f32: [0,1] range reduction + 17-degree odd minimax poly.

    The range-reduction reciprocal uses the (otherwise idle) EUP approx
    reciprocal refined with one Newton step (~1e-7 rel err), so this is
    roughly half the VALU work of XLA's arctan lowering.
    """
    t = jnp.minimum(jnp.abs(x), jnp.float32(3.0e38))   # keep inf out of 0*inf
    r0 = pl.reciprocal(t, approx=True)                 # EUP slot
    rinv = r0 * (2.0 - t * r0)                         # one Newton refinement
    big = t > 1.0
    r = jnp.where(big, rinv, t)                        # r in [0, 1]
    z = r * r
    p = jnp.float32(_ATAN_COEFFS[-1])
    for coef in _ATAN_COEFFS[-2::-1]:
        p = p * z + jnp.float32(coef)
    a = r + r * (z * p)
    a = jnp.where(big, jnp.float32(HALF_PI) - a, a)
    return jnp.where(x < 0.0, -a, a)


def _loss_t_kernel(x_ref, t_ref, out_ref, acc_ref, *, steps, tile_rows, nblk,
                   rows_last, first_edge, max_blk, track_target_sum):
    """Accumulates the partial sums needed for the weighted-NLL loss.

    acc_ref layout (VMEM, (4, 8, 128) f32) — fixed size, independent of tile:
      acc[0]: sum(target)                        (only if track_target_sum)
      acc[1]: sum over class-0 elements of h
      acc[2]: sum over class-1 elements of (1-h)
      acc[3]: count of class-1 elements
    Per-core partials land in out_ref[(core, 4, 8, 128)]; the tiny scalar
    combine happens in the wrapper.
    """
    c = pl.program_id(0)
    i = pl.program_id(1)
    blk = c * steps + i                      # logical (un-clamped) block index

    @pl.when(i == 0)
    def _():
        acc_ref[...] = jnp.zeros_like(acc_ref)

    x = x_ref[...].astype(jnp.float32)
    t = t_ref[...].astype(jnp.float32)

    # approx_heaviside(x, eps=1) = 0.5 * (1 + 2/pi * atan(x)), clamped at 1e-7.
    h = jnp.maximum(0.5 + jnp.float32(INV_PI) * _fast_atan(x), CLAMP_MIN)
    # class index = target.long(): a single compare for legal {0,1} targets.
    cls1 = t >= 1.0

    def fold(v):                             # (tile_rows,128) -> one (8,128) vreg
        g = tile_rows // SUBLANES
        if g == 1:
            return v
        return jnp.sum(v.reshape(g, SUBLANES, LANES), axis=0)

    # NOTE(v5e): if the bundle dump ever shows these tile-sized temporaries
    # spilling, restructure as lax.fori_loop(unroll=True) over (8,128) row
    # groups with vreg-resident partials; not needed at current tile sizes.
    def accumulate(valid_rows):
        """valid_rows=None -> fully-valid interior fast path (no mask work)."""
        if valid_rows is None:
            c1, c0, tv = cls1, jnp.logical_not(cls1), t
        else:
            rid = jax.lax.broadcasted_iota(jnp.int32, (tile_rows, LANES), 0)
            valid = rid < valid_rows         # per-row mask, no 32-bit global idx
            c1 = jnp.logical_and(valid, cls1)
            c0 = jnp.logical_and(valid, jnp.logical_not(cls1))
            tv = jnp.where(valid, t, 0.0)    # select (never multiply) masking
        acc_ref[1] += fold(jnp.where(c0, h, 0.0))          # class-0 picks h
        acc_ref[2] += fold(jnp.where(c1, 1.0 - h, 0.0))    # class-1 picks 1-h
        acc_ref[3] += fold(jnp.where(c1, 1.0, 0.0))        # class-1 count
        if track_target_sum:
            acc_ref[0] += fold(tv)                         # sum(target)

    emit_interior = first_edge > 0           # compile-time constants
    emit_edge = max_blk > first_edge

    if emit_interior and emit_edge:
        @pl.when(blk < first_edge)           # fully-valid blocks: no mask work
        def _():
            accumulate(None)

        @pl.when(blk >= first_edge)          # partial last block / replayed blocks
        def _():
            vrows = jnp.where(blk == nblk - 1, jnp.int32(rows_last), jnp.int32(0))
            accumulate(vrows)
    elif emit_interior:
        accumulate(None)
    else:
        vrows = jnp.where(blk == nblk - 1, jnp.int32(rows_last), jnp.int32(0))
        accumulate(vrows)

    @pl.when(i == pl.num_programs(1) - 1)
    def _():
        out_ref[0] = acc_ref[...]


def _partial_sums_jax(x, t):
    """[S, A, B, N1] partial sums for a small 1-D chunk, in plain JAX."""
    xf = x.astype(jnp.float32)
    tf = t.astype(jnp.float32)
    h = jnp.maximum(0.5 + INV_PI * jnp.arctan(xf / EPS), CLAMP_MIN)
    cls1 = tf >= 1.0
    a = jnp.sum(jnp.where(cls1, 0.0, h))
    b = jnp.sum(jnp.where(cls1, 1.0 - h, 0.0))
    n1 = jnp.sum(cls1.astype(jnp.float32))
    s = jnp.sum(tf)
    return jnp.stack([s, a, b, n1])


def _finalize(sums, n, assume_binary_target):
    a, b, n1 = sums[1], sums[2], sums[3]
    s = n1 if assume_binary_target else sums[0]
    n_f = jnp.float32(n)
    wp = s / n_f                      # weight_pos = sum(target) / numel
    wn = 1.0 - wp
    n0 = n_f - n1
    num = wp * a + wn * b             # sum(w_i * pick_i)
    den = wp * n0 + wn * n1           # sum(w_i)   (nll 'mean' with weights)
    return -num / den


def _default_num_cores():
    """2 on v7x-class chips (2 TensorCores/device), else 1 (v5e / v6e)."""
    try:
        kind = jax.devices()[0].device_kind.lower()
        if "v7" in kind or "7x" in kind:
            return 2
    except Exception:
        pass
    return 1


def loss_t(inp, target, *, tile_rows=2048, assume_binary_target=True,
           num_cores=None):
    """Pallas implementation of LossT.forward(input, target).

    `inp` / `target` are passed in their original dtypes and widened to f32
    in-VMEM; on mem-bound chips (v5e) prefer int8/bool targets — the target
    stream then costs 1 B/elem instead of 4 B/elem.

    tile_rows: rows (x128 lanes) per grid step; 2048 rows is ~1 MiB f32 per
      input buffer (4 MiB double-buffered for both streams), comfortably
      inside every generation's VMEM.  Sweep 1024..4096.
    assume_binary_target: when True (default) uses sum(target) == #(class-1),
      valid for {0,1} masks, and skips one accumulator stream.  Pass False for
      exact semantics with arbitrary float targets.
    num_cores: leading "parallel" grid axis; defaults to 2 on v7x, 1 otherwise.
    """
    n = int(inp.size)
    x = inp.reshape(-1)
    t = target.reshape(-1)

    n_main = (n // BLOCK_ELEMS) * BLOCK_ELEMS

    if n_main == 0:
        # Tiny input (< 1024 elems): plain JAX, not worth a kernel launch.
        return _finalize(_partial_sums_jax(x, t), n, assume_binary_target)

    if n_main < n:
        # Ragged tail (< 1024 elems) is summed in plain JAX and folded into
        # the final combine — no full-array jnp.pad pass over x / t any more.
        tail_sums = _partial_sums_jax(x[n_main:], t[n_main:])
        x = x[:n_main]
        t = t[:n_main]
        # TODO(synk): the prefix slice above may still materialize one copy of
        # the aligned region; a fully zero-copy ragged path needs 1-D blocks
        # or a manual-DMA (pl.ANY) pipeline.
    else:
        tail_sums = jnp.zeros((4,), jnp.float32)

    rows = n_main // LANES                               # multiple of 8
    tile_rows = max(SUBLANES, (int(tile_rows) // SUBLANES) * SUBLANES)
    tr = min(tile_rows, rows)
    nblk = -(-rows // tr)                                # logical blocks
    rows_last = rows - (nblk - 1) * tr                   # valid rows, last block
    first_edge = nblk - 1 if rows_last < tr else nblk    # first block needing a mask

    nc = num_cores if num_cores is not None else _default_num_cores()
    nc = max(1, min(int(nc), 2, nblk))
    steps = -(-nblk // nc)                               # blocks per core
    max_blk = nc * steps                                 # includes replayed blocks

    x2 = x.reshape(rows, LANES)
    t2 = t.reshape(rows, LANES)

    if nc == 1:
        in_map = lambda c, i: (i, 0)
    else:
        # Clamp so replayed trailing steps on the last core never DMA OOB;
        # their contribution is zeroed in-kernel (blk >= nblk -> 0 valid rows).
        in_map = lambda c, i: (jnp.minimum(c * steps + i, nblk - 1), 0)

    kernel = functools.partial(
        _loss_t_kernel, steps=steps, tile_rows=tr, nblk=nblk,
        rows_last=rows_last, first_edge=first_edge, max_blk=max_blk,
        track_target_sum=not assume_binary_target)

    partials = pl.pallas_call(
        kernel,
        out_shape=jax.ShapeDtypeStruct((nc, 4, SUBLANES, LANES), jnp.float32),
        grid_spec=pltpu.PrefetchScalarGridSpec(
            num_scalar_prefetch=0,
            grid=(nc, steps),
            in_specs=[
                pl.BlockSpec((tr, LANES), in_map),
                pl.BlockSpec((tr, LANES), in_map),
            ],
            out_specs=pl.BlockSpec((1, 4, SUBLANES, LANES),
                                   lambda c, i: (c, 0, 0, 0)),
            scratch_shapes=[pltpu.VMEM((4, SUBLANES, LANES), jnp.float32)],
        ),
        # TODO(synk): confirm on v7x hardware that the size-2 leading
        # "parallel" axis engages both TensorCores; if not, switch it to
        # pltpu.CORE_PARALLEL (or pl.core_map over create_tensorcore_mesh).
        compiler_params=pltpu.CompilerParams(
            dimension_semantics=("parallel", "arbitrary"),
        ),
    )(x2, t2)

    sums = jnp.sum(partials, axis=(0, 2, 3)) + tail_sums   # [S, A, B, N1]
    return _finalize(sums, n, assume_binary_target)


def _reference(inp, target):
    """Pure-JAX reference matching the PyTorch forward."""
    x = inp.astype(jnp.float32)
    t = target.astype(jnp.float32)
    h = 0.5 * (1.0 + (2.0 / math.pi) * jnp.arctan(x / EPS))
    h = jnp.maximum(h, CLAMP_MIN)
    wp = jnp.sum(t) / t.size
    wn = 1.0 - wp
    hf = h.reshape(-1)
    cls1 = t.reshape(-1).astype(jnp.int32) == 1
    picked = jnp.where(cls1, 1.0 - hf, hf)
    w = jnp.where(cls1, wn, wp)
    return -jnp.sum(w * picked) / jnp.sum(w)


if __name__ == "__main__":
    key = jax.random.PRNGKey(0)
    k1, k2, k3, k4, k5, k6, k7, k8 = jax.random.split(key, 8)

    # Case 1: standard NCHW field (2,4,16,16), f32 logits + f32 binary mask.
    # n = 2048 -> zero-copy reshape, single block, interior-only code path.
    inp1 = jax.random.normal(k1, (2, 4, 16, 16), dtype=jnp.float32)
    tgt1 = (jax.random.uniform(k2, (2, 4, 16, 16)) > 0.5).astype(jnp.float32)
    out1 = jax.block_until_ready(loss_t(inp1, tgt1))
    ref1 = jax.block_until_ready(_reference(inp1, tgt1))
    assert jnp.allclose(out1, ref1, rtol=1e-5, atol=1e-5), (out1, ref1)

    # Case 2: tiny ragged input (315 elems, bf16 logits + int8 mask):
    # exercises the plain-JAX small-input fallback path.
    inp2 = jax.random.normal(k3, (3, 3, 7, 5), dtype=jnp.bfloat16)
    tgt2 = (jax.random.uniform(k4, (3, 3, 7, 5)) > 0.5).astype(jnp.int8)
    out2 = jax.block_until_ready(loss_t(inp2, tgt2))
    ref2 = jax.block_until_ready(_reference(inp2, tgt2))
    assert jnp.allclose(out2, ref2, rtol=1e-4, atol=1e-4), (out2, ref2)

    # Case 3: ragged (6138 elems) with a small tile so the kernel sees
    # interior blocks, a partial (masked) last block and, on 2-TC chips, a
    # replayed block; also runs the exact sum(target) accumulator path.
    inp3 = jax.random.normal(k5, (2, 3, 33, 31), dtype=jnp.float32)
    tgt3 = (jax.random.uniform(k6, (2, 3, 33, 31)) > 0.3).astype(jnp.float32)
    out3 = jax.block_until_ready(
        loss_t(inp3, tgt3, tile_rows=16, assume_binary_target=False))
    ref3 = jax.block_until_ready(_reference(inp3, tgt3))
    assert jnp.allclose(out3, ref3, rtol=1e-5, atol=1e-5), (out3, ref3)

    # Case 4: aligned multi-block (2,4,64,64) with an int8 mask: multi-step
    # accumulation, no mask code emitted at all (every block fully valid).
    inp4 = jax.random.normal(k7, (2, 4, 64, 64), dtype=jnp.float32)
    tgt4 = (jax.random.uniform(k8, (2, 4, 64, 64)) > 0.5).astype(jnp.int8)
    out4 = jax.block_until_ready(loss_t(inp4, tgt4, tile_rows=64))
    ref4 = jax.block_until_ready(_reference(inp4, tgt4))
    assert jnp.allclose(out4, ref4, rtol=1e-5, atol=1e-5), (out4, ref4)

    print("KERNEL_OK")
</pallas_src>

<mosaic_0001>
module attributes {stable_mosaic.version = 11 : i64} {
  func.func @_loss_t_kernel(%arg0: i32, %arg1: i32, %arg2: memref<16x128xf32, #tpu.memory_space<vmem>>, %arg3: memref<16x128xf32, #tpu.memory_space<vmem>>, %arg4: memref<1x4x8x128xf32, #tpu.memory_space<vmem>>, %arg5: memref<4x8x128xf32, #tpu.memory_space<vmem>>) attributes {dimension_semantics = [#tpu.dimension_semantics<parallel>, #tpu.dimension_semantics<arbitrary>], iteration_bounds = array<i64: 1, 1>, scalar_prefetch = 0 : i64, scratch_operands = 1 : i64, tpu.core_type = #tpu.core_type<tc>, window_params = [{transform_indices = @transform_0, window_bounds = array<i64: 16, 128>}, {transform_indices = @transform_1, window_bounds = array<i64: 16, 128>}, {transform_indices = @transform_2, window_bounds = array<i64: 1, 4, 8, 128>}]} {
    %c0_i32 = arith.constant 0 : i32
    %0 = arith.cmpi eq, %arg1, %c0_i32 : i32
    %1 = arith.extui %0 : i1 to i32
    %c0_i32_0 = arith.constant 0 : i32
    %2 = arith.cmpi ne, %1, %c0_i32_0 : i32
    scf.if %2 {
      %cst_47 = arith.constant 0.000000e+00 : f32
      %95 = vector.broadcast %cst_47 : f32 to vector<4x8x128xf32>
      %c0_48 = arith.constant 0 : index
      %c0_49 = arith.constant 0 : index
      %c0_50 = arith.constant 0 : index
      %96 = vector.load %arg5[%c0_48, %c0_49, %c0_50] : memref<4x8x128xf32, #tpu.memory_space<vmem>>, vector<4x8x128xf32>
      tpu.vector_store %arg5[%c0_48, %c0_49, %c0_50], %95 {strides = array<i32>} : memref<4x8x128xf32, #tpu.memory_space<vmem>>, vector<4x8x128xf32>,
    } else {
    }
    %c0 = arith.constant 0 : index
    %c0_1 = arith.constant 0 : index
    %3 = vector.load %arg2[%c0, %c0_1] : memref<16x128xf32, #tpu.memory_space<vmem>>, vector<16x128xf32>
    %c0_2 = arith.constant 0 : index
    %c0_3 = arith.constant 0 : index
    %4 = vector.load %arg3[%c0_2, %c0_3] : memref<16x128xf32, #tpu.memory_space<vmem>>, vector<16x128xf32>
    %5 = math.absf %3 : vector<16x128xf32>
    %cst = arith.constant 3.000000e+38 : f32
    %6 = vector.broadcast %cst : f32 to vector<16x128xf32>
    %7 = arith.minimumf %5, %6 : vector<16x128xf32>
    %8 = tpu.reciprocal %7 {approx = true} : vector<16x128xf32> -> vector<16x128xf32>
    %9 = arith.mulf %7, %8 : vector<16x128xf32>
    %cst_4 = arith.constant 2.000000e+00 : f32
    %10 = vector.broadcast %cst_4 : f32 to vector<16x128xf32>
    %11 = arith.subf %10, %9 : vector<16x128xf32>
    %12 = arith.mulf %8, %11 : vector<16x128xf32>
    %cst_5 = arith.constant 1.000000e+00 : f32
    %13 = vector.broadcast %cst_5 : f32 to vector<16x128xf32>
    %14 = arith.cmpf ogt, %7, %13 : vector<16x128xf32>
    %15 = arith.select %14, %12, %7 : vector<16x128xi1>, vector<16x128xf32>
    %16 = arith.mulf %15, %15 : vector<16x128xf32>
    %cst_6 = arith.constant 0.00286622578 : f32
    %17 = vector.broadcast %cst_6 : f32 to vector<16x128xf32>
    %18 = arith.mulf %17, %16 : vector<16x128xf32>
    %cst_7 = arith.constant -0.0161657371 : f32
    %19 = vector.broadcast %cst_7 : f32 to vector<16x128xf32>
    %20 = arith.addf %18, %19 : vector<16x128xf32>
    %21 = arith.mulf %20, %16 : vector<16x128xf32>
    %cst_8 = arith.constant 0.0429096147 : f32
    %22 = vector.broadcast %cst_8 : f32 to vector<16x128xf32>
    %23 = arith.addf %21, %22 : vector<16x128xf32>
    %24 = arith.mulf %23, %16 : vector<16x128xf32>
    %cst_9 = arith.constant -0.0752896368 : f32
    %25 = vector.broadcast %cst_9 : f32 to vector<16x128xf32>
    %26 = arith.addf %24, %25 : vector<16x128xf32>
    %27 = arith.mulf %26, %16 : vector<16x128xf32>
    %cst_10 = arith.constant 0.106562637 : f32
    %28 = vector.broadcast %cst_10 : f32 to vector<16x128xf32>
    %29 = arith.addf %27, %28 : vector<16x128xf32>
    %30 = arith.mulf %29, %16 : vector<16x128xf32>
    %cst_11 = arith.constant -1.420890e-01 : f32
    %31 = vector.broadcast %cst_11 : f32 to vector<16x128xf32>
    %32 = arith.addf %30, %31 : vector<16x128xf32>
    %33 = arith.mulf %32, %16 : vector<16x128xf32>
    %cst_12 = arith.constant 0.199935511 : f32
    %34 = vector.broadcast %cst_12 : f32 to vector<16x128xf32>
    %35 = arith.addf %33, %34 : vector<16x128xf32>
    %36 = arith.mulf %35, %16 : vector<16x128xf32>
    %cst_13 = arith.constant -0.333331466 : f32
    %37 = vector.broadcast %cst_13 : f32 to vector<16x128xf32>
    %38 = arith.addf %36, %37 : vector<16x128xf32>
    %39 = arith.mulf %16, %38 : vector<16x128xf32>
    %40 = arith.mulf %15, %39 : vector<16x128xf32>
    %41 = arith.addf %15, %40 : vector<16x128xf32>
    %cst_14 = arith.constant 1.57079637 : f32
    %42 = vector.broadcast %cst_14 : f32 to vector<16x128xf32>
    %43 = arith.subf %42, %41 : vector<16x128xf32>
    %44 = arith.select %14, %43, %41 : vector<16x128xi1>, vector<16x128xf32>
    %cst_15 = arith.constant 0.000000e+00 : f32
    %45 = vector.broadcast %cst_15 : f32 to vector<16x128xf32>
    %46 = arith.cmpf olt, %3, %45 : vector<16x128xf32>
    %cst_16 = arith.constant 0.000000e+00 : f32
    %47 = vector.broadcast %cst_16 : f32 to vector<16x128xf32>
    %48 = arith.subf %47, %44 : vector<16x128xf32>
    %49 = arith.select %46, %48, %44 : vector<16x128xi1>, vector<16x128xf32>
    %cst_17 = arith.constant 0.318309873 : f32
    %50 = vector.broadcast %cst_17 : f32 to vector<16x128xf32>
    %51 = arith.mulf %50, %49 : vector<16x128xf32>
    %cst_18 = arith.constant 5.000000e-01 : f32
    %52 = vector.broadcast %cst_18 : f32 to vector<16x128xf32>
    %53 = arith.addf %52, %51 : vector<16x128xf32>
    %cst_19 = arith.constant 1.000000e-07 : f32
    %54 = vector.broadcast %cst_19 : f32 to vector<16x128xf32>
    %55 = arith.maximumf %53, %54 : vector<16x128xf32>
    %cst_20 = arith.constant 1.000000e+00 : f32
    %56 = vector.broadcast %cst_20 : f32 to vector<16x128xf32>
    %57 = arith.cmpf oge, %4, %56 : vector<16x128xf32>
    %cst_21 = arith.constant dense<true> : vector<16x128xi1>
    %58 = arith.xori %57, %cst_21 : vector<16x128xi1>
    %c1 = arith.constant 1 : index
    %c0_22 = arith.constant 0 : index
    %c0_23 = arith.constant 0 : index
    %59 = vector.load %arg5[%c1, %c0_22, %c0_23] : memref<4x8x128xf32, #tpu.memory_space<vmem>>, vector<1x8x128xf32>
    %60 = vector.shape_cast %59 : vector<1x8x128xf32> to vector<8x128xf32>
    %cst_24 = arith.constant 0.000000e+00 : f32
    %61 = vector.broadcast %cst_24 : f32 to vector<16x128xf32>
    %62 = arith.select %58, %55, %61 : vector<16x128xi1>, vector<16x128xf32>
    %63 = vector.shape_cast %62 : vector<16x128xf32> to vector<2x8x128xf32>
    %cst_25 = arith.constant dense<0.000000e+00> : vector<8x128xf32>
    %64 = vector.multi_reduction <add>, %63, %cst_25 [0] : vector<2x8x128xf32> to vector<8x128xf32>
    %65 = arith.addf %60, %64 : vector<8x128xf32>
    %c1_26 = arith.constant 1 : index
    %c0_27 = arith.constant 0 : index
    %c0_28 = arith.constant 0 : index
    %66 = vector.load %arg5[%c1_26, %c0_27, %c0_28] : memref<4x8x128xf32, #tpu.memory_space<vmem>>, vector<1x8x128xf32>
    %67 = vector.shape_cast %66 : vector<1x8x128xf32> to vector<8x128xf32>
    %68 = vector.shape_cast %65 : vector<8x128xf32> to vector<1x8x128xf32>
    tpu.vector_store %arg5[%c1_26, %c0_27, %c0_28], %68 {strides = array<i32>} : memref<4x8x128xf32, #tpu.memory_space<vmem>>, vector<1x8x128xf32>,
    %c2 = arith.constant 2 : index
    %c0_29 = arith.constant 0 : index
    %c0_30 = arith.constant 0 : index
    %69 = vector.load %arg5[%c2, %c0_29, %c0_30] : memref<4x8x128xf32, #tpu.memory_space<vmem>>, vector<1x8x128xf32>
    %70 = vector.shape_cast %69 : vector<1x8x128xf32> to vector<8x128xf32>
    %cst_31 = arith.constant 1.000000e+00 : f32
    %71 = vector.broadcast %cst_31 : f32 to vector<16x128xf32>
    %72 = arith.subf %71, %55 : vector<16x128xf32>
    %cst_32 = arith.constant 0.000000e+00 : f32
    %73 = vector.broadcast %cst_32 : f32 to vector<16x128xf32>
    %74 = arith.select %57, %72, %73 : vector<16x128xi1>, vector<16x128xf32>
    %75 = vector.shape_cast %74 : vector<16x128xf32> to vector<2x8x128xf32>
    %cst_33 = arith.constant dense<0.000000e+00> : vector<8x128xf32>
    %76 = vector.multi_reduction <add>, %75, %cst_33 [0] : vector<2x8x128xf32> to vector<8x128xf32>
    %77 = arith.addf %70, %76 : vector<8x128xf32>
    %c2_34 = arith.constant 2 : index
    %c0_35 = arith.constant 0 : index
    %c0_36 = arith.constant 0 : index
    %78 = vector.load %arg5[%c2_34, %c0_35, %c0_36] : memref<4x8x128xf32, #tpu.memory_space<vmem>>, vector<1x8x128xf32>
    %79 = vector.shape_cast %78 : vector<1x8x128xf32> to vector<8x128xf32>
    %80 = vector.shape_cast %77 : vector<8x128xf32> to vector<1x8x128xf32>
    tpu.vector_store %arg5[%c2_34, %c0_35, %c0_36], %80 {strides = array<i32>} : memref<4x8x128xf32, #tpu.memory_space<vmem>>, vector<1x8x128xf32>,
    %c3 = arith.constant 3 : index
    %c0_37 = arith.constant 0 : index
    %c0_38 = arith.constant 0 : index
    %81 = vector.load %arg5[%c3, %c0_37, %c0_38] : memref<4x8x128xf32, #tpu.memory_space<vmem>>, vector<1x8x128xf32>
    %82 = vector.shape_cast %81 : vector<1x8x128xf32> to vector<8x128xf32>
    %cst_39 = arith.constant 1.000000e+00 : f32
    %cst_40 = arith.constant 0.000000e+00 : f32
    %83 = vector.broadcast %cst_39 : f32 to vector<16x128xf32>
    %84 = vector.broadcast %cst_40 : f32 to vector<16x128xf32>
    %85 = arith.select %57, %83, %84 : vector<16x128xi1>, vector<16x128xf32>
    %86 = vector.shape_cast %85 : vector<16x128xf32> to vector<2x8x128xf32>
    %cst_41 = arith.constant dense<0.000000e+00> : vector<8x128xf32>
    %87 = vector.multi_reduction <add>, %86, %cst_41 [0] : vector<2x8x128xf32> to vector<8x128xf32>
    %88 = arith.addf %82, %87 : vector<8x128xf32>
    %c3_42 = arith.constant 3 : index
    %c0_43 = arith.constant 0 : index
    %c0_44 = arith.constant 0 : index
    %89 = vector.load %arg5[%c3_42, %c0_43, %c0_44] : memref<4x8x128xf32, #tpu.memory_space<vmem>>, vector<1x8x128xf32>
    %90 = vector.shape_cast %89 : vector<1x8x128xf32> to vector<8x128xf32>
    %91 = vector.shape_cast %88 : vector<8x128xf32> to vector<1x8x128xf32>
    tpu.vector_store %arg5[%c3_42, %c0_43, %c0_44], %91 {strides = array<i32>} : memref<4x8x128xf32, #tpu.memory_space<vmem>>, vector<1x8x128xf32>,
    %c0_i32_45 = arith.constant 0 : i32
    %92 = arith.cmpi eq, %arg1, %c0_i32_45 : i32
    %93 = arith.extui %92 : i1 to i32
    %c0_i32_46 = arith.constant 0 : i32
    %94 = arith.cmpi ne, %93, %c0_i32_46 : i32
    scf.if %94 {
      %c0_47 = arith.constant 0 : index
      %c0_48 = arith.constant 0 : index
      %c0_49 = arith.constant 0 : index
      %95 = vector.load %arg5[%c0_47, %c0_48, %c0_49] : memref<4x8x128xf32, #tpu.memory_space<vmem>>, vector<4x8x128xf32>
      %c0_50 = arith.constant 0 : index
      %c0_51 = arith.constant 0 : index
      %c0_52 = arith.constant 0 : index
      %c0_53 = arith.constant 0 : index
      %96 = vector.load %arg4[%c0_50, %c0_51, %c0_52, %c0_53] : memref<1x4x8x128xf32, #tpu.memory_space<vmem>>, vector<1x4x8x128xf32>
      %97 = vector.shape_cast %96 : vector<1x4x8x128xf32> to vector<4x8x128xf32>
      %98 = vector.shape_cast %95 : vector<4x8x128xf32> to vector<1x4x8x128xf32>
      tpu.vector_store %arg4[%c0_50, %c0_51, %c0_52, %c0_53], %98 {strides = array<i32>} : memref<1x4x8x128xf32, #tpu.memory_space<vmem>>, vector<1x4x8x128xf32>,
    } else {
    }
    return
  }
  func.func @transform_0(%arg0: i32, %arg1: i32) -> (i32, i32) {
    %c0_i32 = arith.constant 0 : i32
    %c0_i32_0 = arith.constant 0 : i32
    return %arg1, %c0_i32 : i32, i32
  }
  func.func @transform_1(%arg0: i32, %arg1: i32) -> (i32, i32) {
    %c0_i32 = arith.constant 0 : i32
    %c0_i32_0 = arith.constant 0 : i32
    return %arg1, %c0_i32 : i32, i32
  }
  func.func @transform_2(%arg0: i32, %arg1: i32) -> (i32, i32, i32, i32) {
    %c0_i32 = arith.constant 0 : i32
    %c0_i32_0 = arith.constant 0 : i32
    %c0_i32_1 = arith.constant 0 : i32
    %c0_i32_2 = arith.constant 0 : i32
    return %arg0, %c0_i32, %c0_i32_0, %c0_i32_1 : i32, i32, i32, i32
  }
}

</mosaic_0001>

<llo_original>
// kernel: tpu_custom_call.1
$region0: #{tpu_custom_call.1}
  #allocation0 [shape = 'u32[]', space=smem, size = 0x4, offset = 0x4, fixed_abs, tag = 'smem constant byte address 0x4 - core index']
  #allocation1 [shape = 'u32[144,128]{1,0:T(1,128)}', space=vmem, size = 0x12000, scoped, tag = 'internal scratch']
  #allocation2 [shape = 'f32[4,8,128]{2,1,0:T(8,128)}', space=vmem, size = 0x4000, scoped, tag = 'scratch operand']
  %s0 = inlined_call_operand.hbm [shape: f32[16,128], index: 0, kind: input, shape index: {}]
  %s1 = inlined_call_operand.hbm [shape: f32[16,128], index: 1, kind: input, shape index: {}]
  %s2 = inlined_call_operand.hbm [shape: f32[1,4,8,128], index: 2, kind: output, shape index: {}]
  %s3 = sld [smem:[#allocation0]]
  $region34: #{tpu_custom_call.1} parent=0
    _
  %s5 = ssub.s32 1, %s3
  %s6 = scalar_select 0, %s5, %s3
  $region1: #{tpu_custom_call.1} parent=0
    #allocation3 [shape = 'u8[8192]{0}', space=vmem, size = 0x2000, scoped, tag = 'input window, operand 0, single buffered']
    #allocation4 [shape = 's32[1]{0}', space=sflag, size = 0x4, scoped, tag = 'scoped memory for tpu_custom_call.1']
    #allocation5 [shape = 's32[1]{0}', space=sflag, size = 0x4, scoped, tag = 'scoped memory for tpu_custom_call.1']
    #allocation6 [shape = 'u8[8192]{0}', space=vmem, size = 0x2000, scoped, tag = 'input window, operand 1, single buffered']
    #allocation7 [shape = 's32[1]{0}', space=sflag, size = 0x4, scoped, tag = 'scoped memory for tpu_custom_call.1']
    #allocation8 [shape = 'u8[16384]{0}', space=vmem, size = 0x4000, scoped, tag = 'output window, operand 0, single buffered']
    %7 = vsyncpa [#allocation4], 0
    %8 = vsyncpa [#allocation7], 0
    %9 = vsyncpa [#allocation5], 0
    // Predicated region
    $region2: #{tpu_custom_call.1} parent=1 // pred_check
      _
    $region3: #{tpu_custom_call.1} parent=1 // pred_check_branch
      %11 = sbr.rel (0) target = $region5
    $region4: #{tpu_custom_call.1} parent=1 // pred_region
      %s13 = ssub.s32 256, 256
      %14 = vsyncadd [#allocation4], %s13
      %s15 = sshll.u32 [#allocation3], 4
      %s16 = int_to_ptr.vmem [resolvable:$true] %s15
      %21 = dma.hbm_to_vmem [thread:$0]  %s0, 256, %s16, [#allocation4], 128, 128, 8
    $region5: #{tpu_custom_call.1} parent=1 // pred_fallthru
      _
    // Predicated region
    $region6: #{tpu_custom_call.1} parent=1 // pred_check
      _
    $region7: #{tpu_custom_call.1} parent=1 // pred_check_branch
      %23 = sbr.rel (0) target = $region9
    $region8: #{tpu_custom_call.1} parent=1 // pred_region
      %s25 = ssub.s32 256, 256
      %26 = vsyncadd [#allocation7], %s25
      %s27 = sshll.u32 [#allocation6], 4
      %s28 = int_to_ptr.vmem [resolvable:$true] %s27
      %33 = dma.hbm_to_vmem [thread:$0]  %s1, 256, %s28, [#allocation7], 128, 128, 8
    $region9: #{tpu_custom_call.1} parent=1 // pred_fallthru
      _
    // Predicated region
    $region10: #{tpu_custom_call.1} parent=1 // pred_check
      _
    $region11: #{tpu_custom_call.1} parent=1 // pred_check_branch
      %35 = sbr.rel (0) target = $region13
    $region12: #{tpu_custom_call.1} parent=1 // pred_region
      %36 = dma.done [#allocation4], 256
    $region13: #{tpu_custom_call.1} parent=1 // pred_fallthru
      _
    // Predicated region
    $region14: #{tpu_custom_call.1} parent=1 // pred_check
      _
    $region15: #{tpu_custom_call.1} parent=1 // pred_check_branch
      %38 = sbr.rel (0) target = $region17
    $region16: #{tpu_custom_call.1} parent=1 // pred_region
      %39 = dma.done [#allocation7], 256
    $region17: #{tpu_custom_call.1} parent=1 // pred_fallthru
      _
    %p40 = scmp.eq.s32.totalorder 0, 0
    // Predicated region
    $region18: #{tpu_custom_call.1} parent=1 // pred_check
      %p41 = pneg %p40
    $region19: #{tpu_custom_call.1} parent=1 // pred_check_branch
      %43 = sbr.rel (%p41) target = $region21
    $region20: #{tpu_custom_call.1} parent=1 // pred_region
      %44 = vst [vmem:[#allocation2] sm:$0xff] 0.0
      %45 = vst [vmem:[#allocation2 + $0x8] sm:$0xff] 0.0
      %46 = vst [vmem:[#allocation2 + $0x10] sm:$0xff] 0.0
      %47 = vst [vmem:[#allocation2 + $0x18] sm:$0xff] 0.0
    $region21: #{tpu_custom_call.1} parent=1 // pred_fallthru
      _
    %v48 = vld [vmem:[#allocation3] sm:$0xff]
    %v49 = vld [vmem:[#allocation3 + $0x8] sm:$0xff]
    %v50 = vld [vmem:[#allocation6] sm:$0xff]
    %v51 = vld [vmem:[#allocation6 + $0x8] sm:$0xff]
    %v52 = vand.u32 2147483647, %v48
    %v53 = vand.u32 2147483647, %v49
    %v54 = vmin.f32 %v52, 3e+38
    %v55 = vmin.f32 %v53, 3e+38
    %v56 = vrcp.pop %v54
    %v57 = vrcp.pop %v55
    %v58 = vmul.f32 %v54, %v56
    %v59 = vmul.f32 %v55, %v57
    %v60 = vsub.f32 2.0, %v58
    %v61 = vsub.f32 2.0, %v59
    %v62 = vmul.f32 %v56, %v60
    %v63 = vmul.f32 %v57, %v61
    %vm64 = vcmp.gt.f32.partialorder %v54, 1.0
    %vm65 = vcmp.gt.f32.partialorder %v55, 1.0
    %v66 = vsel %vm64, %v62, %v54
    %v67 = vsel %vm65, %v63, %v55
    %v68 = vmul.f32 %v66, %v66
    %v69 = vmul.f32 %v67, %v67
    %v70 = vmul.f32 %v68, 0.0028662258
    %v71 = vmul.f32 %v69, 0.0028662258
    %v72 = vadd.f32 %v70, -0.016165737
    %v73 = vadd.f32 %v71, -0.016165737
    %v74 = vmul.f32 %v72, %v68
    %v75 = vmul.f32 %v73, %v69
    %v76 = vadd.f32 %v74, 0.042909615
    %v77 = vadd.f32 %v75, 0.042909615
    %v78 = vmul.f32 %v76, %v68
    %v79 = vmul.f32 %v77, %v69
    %v80 = vadd.f32 %v78, -0.07528964
    %v81 = vadd.f32 %v79, -0.07528964
    %v82 = vmul.f32 %v80, %v68
    %v83 = vmul.f32 %v81, %v69
    %v84 = vadd.f32 %v82, 0.10656264
    %v85 = vadd.f32 %v83, 0.10656264
    %v86 = vmul.f32 %v84, %v68
    %v87 = vmul.f32 %v85, %v69
    %v88 = vadd.f32 %v86, -0.142089
    %v89 = vadd.f32 %v87, -0.142089
    %v90 = vmul.f32 %v88, %v68
    %v91 = vmul.f32 %v89, %v69
    %v92 = vadd.f32 %v90, 0.19993551
    %v93 = vadd.f32 %v91, 0.19993551
    %v94 = vmul.f32 %v92, %v68
    %v95 = vmul.f32 %v93, %v69
    %v96 = vadd.f32 %v94, -0.33333147
    %v97 = vadd.f32 %v95, -0.33333147
    %v98 = vmul.f32 %v68, %v96
    %v99 = vmul.f32 %v69, %v97
    %v100 = vmul.f32 %v66, %v98
    %v101 = vmul.f32 %v67, %v99
    %v102 = vadd.f32 %v66, %v100
    %v103 = vadd.f32 %v67, %v101
    %v104 = vsub.f32 1.5707964, %v102
    %v105 = vsub.f32 1.5707964, %v103
    %v106 = vsel %vm64, %v104, %v102
    %v107 = vsel %vm65, %v105, %v103
    %vm108 = vcmp.lt.f32.partialorder %v48, 0.0
    %vm109 = vcmp.lt.f32.partialorder %v49, 0.0
    %v110 = vsub.f32 0.0, %v106
    %v111 = vsub.f32 0.0, %v107
    %v112 = vsel %vm108, %v110, %v106
    %v113 = vsel %vm109, %v111, %v107
    %v114 = vmul.f32 %v112, 0.31830987
    %v115 = vmul.f32 %v113, 0.31830987
    %v116 = vadd.f32 %v114, 0.5
    %v117 = vadd.f32 %v115, 0.5
    %v118 = vmax.f32 %v116, 1e-07
    %v119 = vmax.f32 %v117, 1e-07
    %vm120 = vcmp.ge.f32.partialorder %v50, 1.0
    %vm121 = vcmp.ge.f32.partialorder %v51, 1.0
    %vm122 = vmxor %vm120, 1
    %vm123 = vmxor %vm121, 1
    %s124 = scalar_lea.vmem [#allocation2], 8
    %v125 = vld [vmem:[%s124] sm:$0xff]
    %v126 = vsel %vm122, %v118, 0.0
    %v127 = vsel %vm123, %v119, 0.0
    %v128 = vadd.f32 %v126, %v127
    %v129 = vadd.f32 %v125, %v128
    %130 = vst [vmem:[%s124] sm:$0xff] %v129
    %s131 = scalar_lea.vmem [#allocation2], 16
    %v132 = vld [vmem:[%s131] sm:$0xff]
    %v133 = vsub.f32 1.0, %v118
    %v134 = vsub.f32 1.0, %v119
    %v135 = vsel %vm120, %v133, 0.0
    %v136 = vsel %vm121, %v134, 0.0
    %v137 = vadd.f32 %v135, %v136
    %v138 = vadd.f32 %v132, %v137
    %139 = vst [vmem:[%s131] sm:$0xff] %v138
    %s140 = scalar_lea.vmem [#allocation2], 24
    %v141 = vld [vmem:[%s140] sm:$0xff]
    %v142 = vsel %vm120, 1.0, 0.0
    %v143 = vsel %vm121, 1.0, 0.0
    %v144 = vadd.f32 %v142, %v143
    %v145 = vadd.f32 %v141, %v144
    %146 = vst [vmem:[%s140] sm:$0xff] %v145
    // Predicated region
    $region22: #{tpu_custom_call.1} parent=1 // pred_check
      %p147 = pneg %p40
    $region23: #{tpu_custom_call.1} parent=1 // pred_check_branch
      %149 = sbr.rel (%p147) target = $region25
    $region24: #{tpu_custom_call.1} parent=1 // pred_region
      %v150 = vld [vmem:[#allocation2] sm:$0xff]
      %v151 = vld [vmem:[#allocation2 + $0x8] sm:$0xff]
      %v152 = vld [vmem:[#allocation2 + $0x10] sm:$0xff]
      %v153 = vld [vmem:[#allocation2 + $0x18] sm:$0xff]
      %154 = vst [vmem:[#allocation8] sm:$0xff] %v150
      %155 = vst [vmem:[#allocation8 + $0x8] sm:$0xff] %v151
      %156 = vst [vmem:[#allocation8 + $0x10] sm:$0xff] %v152
      %157 = vst [vmem:[#allocation8 + $0x18] sm:$0xff] %v153
    $region25: #{tpu_custom_call.1} parent=1 // pred_fallthru
      _
    // Predicated region
    $region26: #{tpu_custom_call.1} parent=1 // pred_check
      _
    $region27: #{tpu_custom_call.1} parent=1 // pred_check_branch
      %159 = sbr.rel (0) target = $region29
    $region28: #{tpu_custom_call.1} parent=1 // pred_region
      %s161 = ssub.s32 512, 512
      %162 = vsyncadd [#allocation5], %s161
      %s163 = sshll.u32 [#allocation8], 4
      %s164 = int_to_ptr.vmem [resolvable:$true] %s163
      %169 = dma.vmem_to_hbm [thread:$0]  %s164, 512, %s2, [#allocation5], 128, 128, 8
    $region29: #{tpu_custom_call.1} parent=1 // pred_fallthru
      _
    // Predicated region
    $region30: #{tpu_custom_call.1} parent=1 // pred_check
      _
    $region31: #{tpu_custom_call.1} parent=1 // pred_check_branch
      %171 = sbr.rel (0) target = $region33
    $region32: #{tpu_custom_call.1} parent=1 // pred_region
      %172 = dma.done [#allocation5], 512
    $region33: #{tpu_custom_call.1} parent=1 // pred_fallthru
      _
    %173 = vsyncpa [#allocation4], 1
    %174 = vsyncpa [#allocation7], 1
    %175 = vsyncpa [#allocation5], 1

</llo_original>
